<compile_context>
chip_gen: v7x
topology: tpu7x:2x2x1
jax: 0.10.0
libtpu: 0.0.40
codegen_flags: <defaults>
</compile_context>

<pallas_src>
import functools

import jax
import jax.numpy as jnp
from jax import lax
from jax.experimental import pallas as pl
from jax.experimental.pallas import tpu as pltpu

EPS = 1e-5  # PyTorch BatchNorm1d default eps


# ---------------------------------------------------------------------------
# VMEM / tile sizing
# ---------------------------------------------------------------------------
def _vmem_config():
    """Return (vmem_limit_bytes, tile byte budget) sized to the chip."""
    try:
        cap = pltpu.get_tpu_info().vmem_capacity_bytes
        if not cap or cap < (16 << 20):
            cap = 64 << 20
    except Exception:
        cap = 64 << 20  # conservative fallback (v7x per-TC VMEM)
    limit = min(cap * 3 // 4, 96 << 20)   # leave headroom below physical
    budget = limit // 2                   # headroom for W, stats, scratch
    return int(limit), int(budget)


def _choose_tile_m(m, cin, g, budget):
    """Rows per tile: fill ~budget bytes with the double-buffered x/out tiles."""
    bytes_per_row = 4 * (2 * cin + g)          # f32 x-row + f32 out-row
    tile_m = budget // (2 * bytes_per_row)     # 2x for double buffering
    tile_m = (tile_m // 8) * 8
    m_aligned = max(8, (m // 8) * 8)
    return int(max(8, min(tile_m, m_aligned, 4096)))


# ---------------------------------------------------------------------------
# Pass 1: per-channel partial batch statistics of y = x @ W (per-core partials)
# ---------------------------------------------------------------------------
def _stats_kernel(x_ref, w_ref, part_ref, *, tile_m, tiles_per_core, m_total):
    t = pl.program_id(1)

    @pl.when(t == 0)
    def _():
        part_ref[...] = jnp.zeros_like(part_ref)

    # Global row indices of this (virtual) tile; mask rows past the batch.
    row0 = (pl.program_id(0) * tiles_per_core + t) * tile_m
    rows = row0 + lax.broadcasted_iota(jnp.int32, (tile_m, 1), 0)
    valid = rows < m_total

    y = jnp.dot(x_ref[...], w_ref[...], preferred_element_type=jnp.float32)
    y = jnp.where(valid, y, 0.0)
    part_ref[...] += jnp.concatenate(
        [jnp.sum(y, axis=0, keepdims=True),
         jnp.sum(y * y, axis=0, keepdims=True)], axis=0)


# ---------------------------------------------------------------------------
# Pass 2: matmul + folded BN affine + SiLU + fused concat output
# ---------------------------------------------------------------------------
def _apply_kernel(x_ref, w_ref, sb_ref, o_ref):
    x = x_ref[...]
    y = jnp.dot(x, w_ref[...], preferred_element_type=jnp.float32)
    z = y * sb_ref[0:1, :] + sb_ref[1:2, :]        # folded scale / bias
    act = z * jax.nn.sigmoid(z)                    # SiLU
    # Single lane-dense store of the fused concat block.
    o_ref[...] = jnp.concatenate([x, act], axis=1).astype(o_ref.dtype)


# ---------------------------------------------------------------------------
# Wrapper
# ---------------------------------------------------------------------------
def dense_layer_linear(x, w, gamma, beta, *, tile_m=None):
    """x: (M, Cin) f32; w: (Cin, G) f32 (transposed torch Linear weight)."""
    m, cin = x.shape
    cin_w, g = w.shape
    assert cin == cin_w

    vmem_limit, budget = _vmem_config()
    if tile_m is None:
        tile_m = _choose_tile_m(m, cin, g, budget)
    tile_m = max(8, (int(tile_m) // 8) * 8)

    n_tiles = pl.cdiv(m, tile_m)
    splits = 2 if n_tiles >= 2 else 1          # per-TC partial-stats rows
    tiles_per_core = pl.cdiv(n_tiles, splits)

    def stats_x_map(c, t):
        vt = c * tiles_per_core + t
        # Clamp overhang virtual tiles to a valid block; their rows are masked
        # out inside the kernel anyway.
        return (jnp.minimum(vt, n_tiles - 1), 0)

    part = pl.pallas_call(
        functools.partial(_stats_kernel, tile_m=tile_m,
                          tiles_per_core=tiles_per_core, m_total=m),
        out_shape=jax.ShapeDtypeStruct((splits, 2, g), jnp.float32),
        grid_spec=pltpu.PrefetchScalarGridSpec(
            num_scalar_prefetch=0,
            grid=(splits, tiles_per_core),
            in_specs=[
                pl.BlockSpec((tile_m, cin), stats_x_map),
                pl.BlockSpec((cin, g), lambda c, t: (0, 0)),
            ],
            out_specs=pl.BlockSpec((None, 2, g), lambda c, t: (c, 0, 0)),
        ),
        compiler_params=pltpu.CompilerParams(
            dimension_semantics=("parallel", "arbitrary"),
            vmem_limit_bytes=vmem_limit),
        cost_estimate=pl.CostEstimate(
            flops=2 * m * cin * g + 4 * m * g,
            transcendentals=0,
            bytes_accessed=4 * (m * cin + cin * g + 2 * splits * g)),
    )(x, w)

    # Combine per-core partials and fold BN affine into scale/bias.  O(G) work.
    # TODO(synk): E[y^2]-E[y]^2 in f32 can cancel for inputs with a huge DC
    # component; a Welford/shifted accumulation would be more robust.
    sums = jnp.sum(part, axis=0)                        # (2, g)
    mean = sums[0] / m
    var = jnp.maximum(sums[1] / m - mean * mean, 0.0)   # biased var (train BN)
    rstd = lax.rsqrt(var + EPS)
    scale = rstd * gamma
    bias = beta - mean * scale
    sb = jnp.stack([scale, bias], axis=0)               # (2, g)

    out = pl.pallas_call(
        _apply_kernel,
        out_shape=jax.ShapeDtypeStruct((m, cin + g), x.dtype),
        grid_spec=pltpu.PrefetchScalarGridSpec(
            num_scalar_prefetch=0,
            grid=(n_tiles,),
            in_specs=[
                pl.BlockSpec((tile_m, cin), lambda t: (t, 0)),
                pl.BlockSpec((cin, g), lambda t: (0, 0)),
                pl.BlockSpec((2, g), lambda t: (0, 0)),
            ],
            out_specs=pl.BlockSpec((tile_m, cin + g), lambda t: (t, 0)),
        ),
        compiler_params=pltpu.CompilerParams(
            dimension_semantics=("parallel",),      # megacore over batch tiles
            vmem_limit_bytes=vmem_limit),
        cost_estimate=pl.CostEstimate(
            flops=2 * m * cin * g + 6 * m * g,
            transcendentals=m * g,
            bytes_accessed=4 * (m * cin + cin * g + 2 * g + m * (cin + g))),
    )(x, w, sb)
    return out


class DenselayerLinearPallas:
    """JAX/Pallas equivalent of DenselayerLinear (forward, train-mode BN)."""

    def __init__(self, num_input, growth_rate, key):
        self.num_input = num_input
        self.growth_rate = growth_rate
        # torch Linear default init: U(-1/sqrt(fan_in), 1/sqrt(fan_in)),
        # weight layout (growth_rate, num_input); kept transposed for x @ w.
        bound = 1.0 / (num_input ** 0.5)
        w_torch = jax.random.uniform(key, (growth_rate, num_input),
                                     jnp.float32, -bound, bound)
        self.w = jnp.transpose(w_torch)                      # (Cin, G)
        self.gamma = jnp.ones((growth_rate,), jnp.float32)   # BN affine init
        self.beta = jnp.zeros((growth_rate,), jnp.float32)

    def __call__(self, x, *, tile_m=None):
        return dense_layer_linear(x, self.w, self.gamma, self.beta,
                                  tile_m=tile_m)


# ---------------------------------------------------------------------------
# Pure-JAX reference for validation
# ---------------------------------------------------------------------------
def reference_forward(x, w, gamma, beta):
    y = x @ w
    mean = jnp.mean(y, axis=0, keepdims=True)
    var = jnp.mean((y - mean) ** 2, axis=0, keepdims=True)
    z = (y - mean) * lax.rsqrt(var + EPS) * gamma + beta
    act = z * jax.nn.sigmoid(z)
    return jnp.concatenate([x, act], axis=1)


if __name__ == "__main__":
    key = jax.random.PRNGKey(0)
    kx, kw, kg, kb, kx2 = jax.random.split(key, 5)

    num_input, growth_rate, batch = 32, 8, 256
    x = jax.random.normal(kx, (batch, num_input), jnp.float32)
    layer = DenselayerLinearPallas(num_input, growth_rate, kw)
    # Non-trivial BN affine to exercise the folded scale/bias path.
    layer.gamma = 1.0 + 0.5 * jax.random.normal(kg, (growth_rate,), jnp.float32)
    layer.beta = 0.1 * jax.random.normal(kb, (growth_rate,), jnp.float32)

    ref = reference_forward(x, layer.w, layer.gamma, layer.beta)

    def check(out, expect):
        assert out.shape == expect.shape, (out.shape, expect.shape)
        err = float(jnp.max(jnp.abs(out - expect)))
        assert jnp.allclose(out, expect, atol=1e-3, rtol=1e-3), err

    # 1) Auto-sized tile (single block at this small batch).
    check(jax.block_until_ready(layer(x)), ref)

    # 2) Forced small tile: 4 tiles -> 2-way split stats grid (2 x 2).
    check(jax.block_until_ready(layer(x, tile_m=64)), ref)

    # 3) Tile that does not divide the batch: cdiv grid + padded-row masking.
    check(jax.block_until_ready(layer(x, tile_m=48)), ref)

    # 4) Batch that is neither a multiple of the tile nor of 8.
    x_odd = jax.random.normal(kx2, (250, num_input), jnp.float32)
    ref_odd = reference_forward(x_odd, layer.w, layer.gamma, layer.beta)
    check(jax.block_until_ready(layer(x_odd, tile_m=64)), ref_odd)

    # TODO(synk): BatchNorm1d running_mean/running_var buffer updates (a
    # training-time side effect) are not emulated; forward output unaffected.
    print("KERNEL_OK")
</pallas_src>

<mosaic_0001>
module attributes {stable_mosaic.version = 11 : i64} {
  func.func @_stats_kernel(%arg0: i32, %arg1: i32, %arg2: memref<256x32xf32, #tpu.memory_space<vmem>>, %arg3: memref<32x8xf32, #tpu.memory_space<vmem>>, %arg4: memref<1x2x8xf32, #tpu.memory_space<vmem>>) attributes {dimension_semantics = [#tpu.dimension_semantics<parallel>, #tpu.dimension_semantics<arbitrary>], iteration_bounds = array<i64: 1, 1>, scalar_prefetch = 0 : i64, scratch_operands = 0 : i64, tpu.core_type = #tpu.core_type<tc>, window_params = [{transform_indices = @transform_0, window_bounds = array<i64: 256, 32>}, {pipeline_mode = #tpu.pipeline_mode<synchronous>, transform_indices = @transform_1, window_bounds = array<i64: 32, 8>}, {transform_indices = @transform_2, window_bounds = array<i64: 1, 2, 8>}]} {
    %c0_i32 = arith.constant 0 : i32
    %0 = arith.cmpi eq, %arg1, %c0_i32 : i32
    %1 = arith.extui %0 : i1 to i32
    %c0_i32_0 = arith.constant 0 : i32
    %2 = arith.cmpi ne, %1, %c0_i32_0 : i32
    scf.if %2 {
      %cst_14 = arith.constant 0.000000e+00 : f32
      %30 = vector.broadcast %cst_14 : f32 to vector<2x8xf32>
      %c0_15 = arith.constant 0 : index
      %c0_16 = arith.constant 0 : index
      %c0_17 = arith.constant 0 : index
      %31 = vector.load %arg4[%c0_15, %c0_16, %c0_17] : memref<1x2x8xf32, #tpu.memory_space<vmem>>, vector<1x2x8xf32>
      %32 = vector.shape_cast %31 : vector<1x2x8xf32> to vector<2x8xf32>
      %33 = vector.shape_cast %30 : vector<2x8xf32> to vector<1x2x8xf32>
      tpu.vector_store %arg4[%c0_15, %c0_16, %c0_17], %33 {strides = array<i32>} : memref<1x2x8xf32, #tpu.memory_space<vmem>>, vector<1x2x8xf32>,
    } else {
    }
    %c1_i32 = arith.constant 1 : i32
    %3 = arith.muli %arg0, %c1_i32 : i32
    %4 = arith.addi %3, %arg1 : i32
    %c256_i32 = arith.constant 256 : i32
    %5 = arith.muli %4, %c256_i32 : i32
    %6 = tpu.iota {dimensions = array<i32: 0>} : vector<256x1xi32>
    %7 = vector.broadcast %5 : i32 to vector<256x1xi32>
    %8 = arith.addi %7, %6 : vector<256x1xi32>
    %c256_i32_1 = arith.constant 256 : i32
    %9 = vector.broadcast %c256_i32_1 : i32 to vector<256x1xi32>
    %10 = arith.cmpi slt, %8, %9 : vector<256x1xi32>
    %c0 = arith.constant 0 : index
    %c0_2 = arith.constant 0 : index
    %11 = vector.load %arg2[%c0, %c0_2] : memref<256x32xf32, #tpu.memory_space<vmem>>, vector<256x32xf32>
    %c0_3 = arith.constant 0 : index
    %c0_4 = arith.constant 0 : index
    %12 = vector.load %arg3[%c0_3, %c0_4] : memref<32x8xf32, #tpu.memory_space<vmem>>, vector<32x8xf32>
    %cst = arith.constant dense<0.000000e+00> : vector<256x8xf32>
    %13 = tpu.matmul %11, %12, %cst {dimension_numbers = #tpu.dot_dimension_numbers<[1], [0], [0], [1], [0, 0, 1, 1], [], []>} : vector<256x32xf32>, vector<32x8xf32>, vector<256x8xf32> -> vector<256x8xf32>
    %cst_5 = arith.constant 0.000000e+00 : f32
    %14 = vector.shape_cast %10 : vector<256x1xi1> to vector<256x1xi1>
    %15 = vector.broadcast %14 : vector<256x1xi1> to vector<256x8xi1>
    %16 = vector.broadcast %cst_5 : f32 to vector<256x8xf32>
    %17 = arith.select %15, %13, %16 : vector<256x8xi1>, vector<256x8xf32>
    %c0_6 = arith.constant 0 : index
    %c0_7 = arith.constant 0 : index
    %c0_8 = arith.constant 0 : index
    %18 = vector.load %arg4[%c0_6, %c0_7, %c0_8] : memref<1x2x8xf32, #tpu.memory_space<vmem>>, vector<1x2x8xf32>
    %19 = vector.shape_cast %18 : vector<1x2x8xf32> to vector<2x8xf32>
    %cst_9 = arith.constant dense<0.000000e+00> : vector<8xf32>
    %20 = vector.multi_reduction <add>, %17, %cst_9 [0] : vector<256x8xf32> to vector<8xf32>
    %21 = vector.shape_cast %20 : vector<8xf32> to vector<1x8xf32>
    %22 = arith.mulf %17, %17 : vector<256x8xf32>
    %cst_10 = arith.constant dense<0.000000e+00> : vector<8xf32>
    %23 = vector.multi_reduction <add>, %22, %cst_10 [0] : vector<256x8xf32> to vector<8xf32>
    %24 = vector.shape_cast %23 : vector<8xf32> to vector<1x8xf32>
    %25 = tpu.concatenate %21, %24 in 0 : vector<1x8xf32>, vector<1x8xf32> -> vector<2x8xf32>
    %26 = arith.addf %19, %25 : vector<2x8xf32>
    %c0_11 = arith.constant 0 : index
    %c0_12 = arith.constant 0 : index
    %c0_13 = arith.constant 0 : index
    %27 = vector.load %arg4[%c0_11, %c0_12, %c0_13] : memref<1x2x8xf32, #tpu.memory_space<vmem>>, vector<1x2x8xf32>
    %28 = vector.shape_cast %27 : vector<1x2x8xf32> to vector<2x8xf32>
    %29 = vector.shape_cast %26 : vector<2x8xf32> to vector<1x2x8xf32>
    tpu.vector_store %arg4[%c0_11, %c0_12, %c0_13], %29 {strides = array<i32>} : memref<1x2x8xf32, #tpu.memory_space<vmem>>, vector<1x2x8xf32>,
    return
  }
  func.func @transform_0(%arg0: i32, %arg1: i32) -> (i32, i32) {
    %c1_i32 = arith.constant 1 : i32
    %0 = arith.muli %arg0, %c1_i32 : i32
    %1 = arith.addi %0, %arg1 : i32
    %c0_i32 = arith.constant 0 : i32
    %2 = arith.minsi %1, %c0_i32 : i32
    %c0_i32_0 = arith.constant 0 : i32
    %c0_i32_1 = arith.constant 0 : i32
    return %2, %c0_i32_0 : i32, i32
  }
  func.func @transform_1(%arg0: i32, %arg1: i32) -> (i32, i32) {
    %c0_i32 = arith.constant 0 : i32
    %c0_i32_0 = arith.constant 0 : i32
    %c0_i32_1 = arith.constant 0 : i32
    return %c0_i32, %c0_i32_0 : i32, i32
  }
  func.func @transform_2(%arg0: i32, %arg1: i32) -> (i32, i32, i32) {
    %c0_i32 = arith.constant 0 : i32
    %c0_i32_0 = arith.constant 0 : i32
    %c0_i32_1 = arith.constant 0 : i32
    return %arg0, %c0_i32, %c0_i32_0 : i32, i32, i32
  }
}

</mosaic_0001>

<llo_original>
// kernel: tpu_custom_call.1
$region0: #{tpu_custom_call.1}
  #allocation0 [shape = 'u32[]', space=smem, size = 0x4, offset = 0x4, fixed_abs, tag = 'smem constant byte address 0x4 - core index']
  #allocation1 [shape = 'u32[144,128]{1,0:T(1,128)}', space=vmem, size = 0x12000, scoped, tag = 'internal scratch']
  %s0 = inlined_call_operand.vmem [shape: f32[256,32], index: 0, kind: input, shape index: {}]
  %s1 = inlined_call_operand.vmem [shape: f32[32,8], index: 1, kind: input, shape index: {}]
  %s2 = inlined_call_operand.hbm [shape: f32[1,2,8], index: 2, kind: output, shape index: {}]
  %s3 = sld [smem:[#allocation0]]
  $region22: #{tpu_custom_call.1} parent=0
    _
  %s5 = ssub.s32 1, %s3
  %s6 = scalar_select 0, %s5, %s3
  $region1: #{tpu_custom_call.1} parent=0
    #allocation2 [shape = 'u8[1024]{0}', space=vmem, size = 0x400, scoped, tag = 'output window, operand 0, single buffered']
    #allocation3 [shape = 's32[1]{0}', space=sflag, size = 0x4, scoped, tag = 'scoped memory for tpu_custom_call.1']
    %7 = vsyncpa [#allocation3], 0
    // Predicated region
    $region2: #{tpu_custom_call.1} parent=1 // pred_check
      _
    $region3: #{tpu_custom_call.1} parent=1 // pred_check_branch
      %9 = sbr.rel (0) target = $region5
    $region4: #{tpu_custom_call.1} parent=1 // pred_region
      %s10 = sadd.s32 0, 0
      %p11 = scmp.lt.s32.totalorder %s10, 0
      %s12 = scalar_select %p11, %s10, 0
      %s13 = smul.u32 32, %s12
      %p14 = scmp.lt.s32.totalorder %s13, 31
      %s15 = scalar_select %p14, %s13, 31
      %s16 = smul.addr %s15, 8
      %s17 = scalar_lea.vmem %s0, %s16
      %s18 = sadd.s32 0, 0
      %p19 = scmp.lt.s32.totalorder %s18, 0
      %s20 = scalar_select %p19, %s18, 0
      %s21 = smul.u32 32, %s20
    $region5: #{tpu_custom_call.1} parent=1 // pred_fallthru
      _
    // Predicated region
    $region6: #{tpu_custom_call.1} parent=1 // pred_check
      _
    $region7: #{tpu_custom_call.1} parent=1 // pred_check_branch
      %23 = sbr.rel (0) target = $region9
    $region8: #{tpu_custom_call.1} parent=1 // pred_region
      _
    $region9: #{tpu_custom_call.1} parent=1 // pred_fallthru
      _
    %s24 = sadd.s32 0, 0
    %p25 = scmp.lt.s32.totalorder %s24, 0
    %s26 = scalar_select %p25, %s24, 0
    %s27 = smul.u32 32, %s26
    %p28 = scmp.lt.s32.totalorder %s27, 31
    %s29 = scalar_select %p28, %s27, 31
    %s30 = smul.addr %s29, 8
    %s31 = scalar_lea.vmem %s0, %s30
    %s32 = sadd.s32 0, 0
    %p33 = scmp.lt.s32.totalorder %s32, 0
    %s34 = scalar_select %p33, %s32, 0
    %s35 = smul.u32 32, %s34
    %p36 = scmp.lt.s32.totalorder %s35, 31
    %s37 = scalar_select %p36, %s35, 31
    %s38 = smul.addr %s37, 8
    %s39 = scalar_lea.vmem %s0, %s38
    %s40 = sadd.s32 0, 0
    %p41 = scmp.lt.s32.totalorder %s40, 0
    %s42 = scalar_select %p41, %s40, 0
    %s43 = smul.u32 32, %s42
    %p44 = scmp.eq.s32.totalorder 0, 0
    // Predicated region
    $region10: #{tpu_custom_call.1} parent=1 // pred_check
      %p45 = pneg %p44
    $region11: #{tpu_custom_call.1} parent=1 // pred_check_branch
      %47 = sbr.rel (%p45) target = $region13
    $region12: #{tpu_custom_call.1} parent=1 // pred_region
      %vm48 = vcmask 58368
      %49 = vst.msk [vmem:[#allocation2] sm:$0x3] %vm48, 0.0
    $region13: #{tpu_custom_call.1} parent=1 // pred_fallthru
      _
    %s50 = sadd.s32 0, 0
    %s51 = smul.u32 %s50, 256
    %v52 = vlaneseq
    %v53 = vshrl.u32 %v52, 7
    %v54 = vadd.s32 %v53, 8
    %v55 = vadd.s32 %v53, 16
    %v56 = vadd.s32 %v53, 24
    %v57 = vadd.s32 %v53, 32
    %v58 = vadd.s32 %v53, 40
    %v59 = vadd.s32 %v53, 48
    %v60 = vadd.s32 %v53, 56
    %v61 = vadd.s32 %v53, 64
    %v62 = vadd.s32 %v53, 72
    %v63 = vadd.s32 %v53, 80
    %v64 = vadd.s32 %v53, 88
    %v65 = vadd.s32 %v53, 96
    %v66 = vadd.s32 %v53, 104
    %v67 = vadd.s32 %v53, 112
    %v68 = vadd.s32 %v53, 120
    %v69 = vadd.s32 %v53, 128
    %v70 = vadd.s32 %v53, 136
    %v71 = vadd.s32 %v53, 144
    %v72 = vadd.s32 %v53, 152
    %v73 = vadd.s32 %v53, 160
    %v74 = vadd.s32 %v53, 168
    %v75 = vadd.s32 %v53, 176
    %v76 = vadd.s32 %v53, 184
    %v77 = vadd.s32 %v53, 192
    %v78 = vadd.s32 %v53, 200
    %v79 = vadd.s32 %v53, 208
    %v80 = vadd.s32 %v53, 216
    %v81 = vadd.s32 %v53, 224
    %v82 = vadd.s32 %v53, 232
    %v83 = vadd.s32 %v53, 240
    %v84 = vadd.s32 %v53, 248
    %v85 = vstv %s51
    %v86 = vadd.s32 %v85, %v53
    %v87 = vadd.s32 %v85, %v54
    %v88 = vadd.s32 %v85, %v55
    %v89 = vadd.s32 %v85, %v56
    %v90 = vadd.s32 %v85, %v57
    %v91 = vadd.s32 %v85, %v58
    %v92 = vadd.s32 %v85, %v59
    %v93 = vadd.s32 %v85, %v60
    %v94 = vadd.s32 %v85, %v61
    %v95 = vadd.s32 %v85, %v62
    %v96 = vadd.s32 %v85, %v63
    %v97 = vadd.s32 %v85, %v64
    %v98 = vadd.s32 %v85, %v65
    %v99 = vadd.s32 %v85, %v66
    %v100 = vadd.s32 %v85, %v67
    %v101 = vadd.s32 %v85, %v68
    %v102 = vadd.s32 %v85, %v69
    %v103 = vadd.s32 %v85, %v70
    %v104 = vadd.s32 %v85, %v71
    %v105 = vadd.s32 %v85, %v72
    %v106 = vadd.s32 %v85, %v73
    %v107 = vadd.s32 %v85, %v74
    %v108 = vadd.s32 %v85, %v75
    %v109 = vadd.s32 %v85, %v76
    %v110 = vadd.s32 %v85, %v77
    %v111 = vadd.s32 %v85, %v78
    %v112 = vadd.s32 %v85, %v79
    %v113 = vadd.s32 %v85, %v80
    %v114 = vadd.s32 %v85, %v81
    %v115 = vadd.s32 %v85, %v82
    %v116 = vadd.s32 %v85, %v83
    %v117 = vadd.s32 %v85, %v84
    %vm118 = vcmp.lt.s32.totalorder %v86, 256
    %vm119 = vcmp.lt.s32.totalorder %v87, 256
    %vm120 = vcmp.lt.s32.totalorder %v88, 256
    %vm121 = vcmp.lt.s32.totalorder %v89, 256
    %vm122 = vcmp.lt.s32.totalorder %v90, 256
    %vm123 = vcmp.lt.s32.totalorder %v91, 256
    %vm124 = vcmp.lt.s32.totalorder %v92, 256
    %vm125 = vcmp.lt.s32.totalorder %v93, 256
    %vm126 = vcmp.lt.s32.totalorder %v94, 256
    %vm127 = vcmp.lt.s32.totalorder %v95, 256
    %vm128 = vcmp.lt.s32.totalorder %v96, 256
    %vm129 = vcmp.lt.s32.totalorder %v97, 256
    %vm130 = vcmp.lt.s32.totalorder %v98, 256
    %vm131 = vcmp.lt.s32.totalorder %v99, 256
    %vm132 = vcmp.lt.s32.totalorder %v100, 256
    %vm133 = vcmp.lt.s32.totalorder %v101, 256
    %vm134 = vcmp.lt.s32.totalorder %v102, 256
    %vm135 = vcmp.lt.s32.totalorder %v103, 256
    %vm136 = vcmp.lt.s32.totalorder %v104, 256
    %vm137 = vcmp.lt.s32.totalorder %v105, 256
    %vm138 = vcmp.lt.s32.totalorder %v106, 256
    %vm139 = vcmp.lt.s32.totalorder %v107, 256
    %vm140 = vcmp.lt.s32.totalorder %v108, 256
    %vm141 = vcmp.lt.s32.totalorder %v109, 256
    %vm142 = vcmp.lt.s32.totalorder %v110, 256
    %vm143 = vcmp.lt.s32.totalorder %v111, 256
    %vm144 = vcmp.lt.s32.totalorder %v112, 256
    %vm145 = vcmp.lt.s32.totalorder %v113, 256
    %vm146 = vcmp.lt.s32.totalorder %v114, 256
    %vm147 = vcmp.lt.s32.totalorder %v115, 256
    %vm148 = vcmp.lt.s32.totalorder %v116, 256
    %vm149 = vcmp.lt.s32.totalorder %v117, 256
    %v150 = vld [vmem:[%s39] sm:$0xff]
    %v151 = vld [vmem:[%s39 + $0x8] sm:$0xff]
    %v152 = vld [vmem:[%s39 + $0x10] sm:$0xff]
    %v153 = vld [vmem:[%s39 + $0x18] sm:$0xff]
    %v154 = vld [vmem:[%s39 + $0x20] sm:$0xff]
    %v155 = vld [vmem:[%s39 + $0x28] sm:$0xff]
    %v156 = vld [vmem:[%s39 + $0x30] sm:$0xff]
    %v157 = vld [vmem:[%s39 + $0x38] sm:$0xff]
    %v158 = vld [vmem:[%s39 + $0x40] sm:$0xff]
    %v159 = vld [vmem:[%s39 + $0x48] sm:$0xff]
    %v160 = vld [vmem:[%s39 + $0x50] sm:$0xff]
    %v161 = vld [vmem:[%s39 + $0x58] sm:$0xff]
    %v162 = vld [vmem:[%s39 + $0x60] sm:$0xff]
    %v163 = vld [vmem:[%s39 + $0x68] sm:$0xff]
    %v164 = vld [vmem:[%s39 + $0x70] sm:$0xff]
    %v165 = vld [vmem:[%s39 + $0x78] sm:$0xff]
    %v166 = vld [vmem:[%s39 + $0x80] sm:$0xff]
    %v167 = vld [vmem:[%s39 + $0x88] sm:$0xff]
    %v168 = vld [vmem:[%s39 + $0x90] sm:$0xff]
    %v169 = vld [vmem:[%s39 + $0x98] sm:$0xff]
    %v170 = vld [vmem:[%s39 + $0xa0] sm:$0xff]
    %v171 = vld [vmem:[%s39 + $0xa8] sm:$0xff]
    %v172 = vld [vmem:[%s39 + $0xb0] sm:$0xff]
    %v173 = vld [vmem:[%s39 + $0xb8] sm:$0xff]
    %v174 = vld [vmem:[%s39 + $0xc0] sm:$0xff]
    %v175 = vld [vmem:[%s39 + $0xc8] sm:$0xff]
    %v176 = vld [vmem:[%s39 + $0xd0] sm:$0xff]
    %v177 = vld [vmem:[%s39 + $0xd8] sm:$0xff]
    %v178 = vld [vmem:[%s39 + $0xe0] sm:$0xff]
    %v179 = vld [vmem:[%s39 + $0xe8] sm:$0xff]
    %v180 = vld [vmem:[%s39 + $0xf0] sm:$0xff]
    %v181 = vld [vmem:[%s39 + $0xf8] sm:$0xff]
    %v182 = vld [vmem:[%s1] sm:$0xff]
    %v183 = vld [vmem:[%s1 + $0x8] sm:$0xff]
    %v184 = vld [vmem:[%s1 + $0x10] sm:$0xff]
    %v185 = vld [vmem:[%s1 + $0x18] sm:$0xff]
    %vm186 = vcmask 261120
    %v188 = vsel %vm186, %v150, 0
    %v191 = vsel %vm186, %v151, 0
    %v194 = vsel %vm186, %v152, 0
    %v197 = vsel %vm186, %v153, 0
    %v200 = vsel %vm186, %v154, 0
    %v203 = vsel %vm186, %v155, 0
    %v206 = vsel %vm186, %v156, 0
    %v209 = vsel %vm186, %v157, 0
    %v212 = vsel %vm186, %v158, 0
    %v215 = vsel %vm186, %v159, 0
    %v218 = vsel %vm186, %v160, 0
    %v221 = vsel %vm186, %v161, 0
    %v224 = vsel %vm186, %v162, 0
    %v227 = vsel %vm186, %v163, 0
    %v230 = vsel %vm186, %v164, 0
    %v233 = vsel %vm186, %v165, 0
    %v236 = vsel %vm186, %v166, 0
    %v239 = vsel %vm186, %v167, 0
    %v242 = vsel %vm186, %v168, 0
    %v245 = vsel %vm186, %v169, 0
    %v248 = vsel %vm186, %v170, 0
    %v251 = vsel %vm186, %v171, 0
    %v254 = vsel %vm186, %v172, 0
    %v257 = vsel %vm186, %v173, 0
    %v260 = vsel %vm186, %v174, 0
    %v263 = vsel %vm186, %v175, 0
    %v266 = vsel %vm186, %v176, 0
    %v269 = vsel %vm186, %v177, 0
    %v272 = vsel %vm186, %v178, 0
    %v275 = vsel %vm186, %v179, 0
    %v278 = vsel %vm186, %v180, 0
    %v281 = vsel %vm186, %v181, 0
    %283 = vmatprep.subr.mxu0 0.0
    %284 = vmatpush1.msra.mxu0 %v182
    %285 = vmatprep.subr.mxu0 0.0
    %286 = vmatpush1.msra.mxu0 %v183
    %287 = vmatprep.subr.mxu0 0.0
    %288 = vmatpush1.msra.mxu0 %v184
    %289 = vmatprep.subr.mxu0 0.0
    %290 = vmatpush1.msra.mxu0 %v185
    %291 = vmatprep.subr.mxu0 0.0
    %292 = vmatpush1.msra.mxu0 0.0
    %293 = vmatprep.subr.mxu0 0.0
    %294 = vmatpush1.msra.mxu0 0.0
    %295 = vmatprep.subr.mxu0 0.0
    %296 = vmatpush1.msra.mxu0 0.0
    %297 = vmatprep.subr.mxu0 0.0
    %298 = vmatpush1.msra.mxu0 0.0
    %299 = vmatprep.subr.mxu0 0.0
    %300 = vmatpush1.msra.mxu0 0.0
    %301 = vmatprep.subr.mxu0 0.0
    %302 = vmatpush1.msra.mxu0 0.0
    %303 = vmatprep.subr.mxu0 0.0
    %304 = vmatpush1.msra.mxu0 0.0
    %305 = vmatprep.subr.mxu0 0.0
    %306 = vmatpush1.msra.mxu0 0.0
    %307 = vmatprep.subr.mxu0 0.0
    %308 = vmatpush1.msra.mxu0 0.0
    %309 = vmatprep.subr.mxu0 0.0
    %310 = vmatpush1.msra.mxu0 0.0
    %311 = vmatprep.subr.mxu0 0.0
    %312 = vmatpush1.msra.mxu0 0.0
    %313 = vmatprep.subr.mxu0 0.0
    %314 = vmatpush1.msra.mxu0 0.0
    %315 = vmatprep.subr.mxu0 0.0
    %316 = vmatpush1.msra.mxu0 0.0
    %317 = vmatprep.subr.mxu0 0.0
    %318 = vmatpush1.msra.mxu0 0.0
    %319 = vmatprep.subr.mxu0 0.0
    %320 = vmatpush1.msra.mxu0 0.0
    %321 = vmatprep.subr.mxu0 0.0
    %322 = vmatpush1.msra.mxu0 0.0
    %323 = vmatprep.subr.mxu0 0.0
    %324 = vmatpush1.msra.mxu0 0.0
    %325 = vmatprep.subr.mxu0 0.0
    %326 = vmatpush1.msra.mxu0 0.0
    %327 = vmatprep.subr.mxu0 0.0
    %328 = vmatpush1.msra.mxu0 0.0
    %329 = vmatprep.subr.mxu0 0.0
    %330 = vmatpush1.msra.mxu0 0.0
    %331 = vmatprep.subr.mxu0 0.0
    %332 = vmatpush1.msra.mxu0 0.0
    %333 = vmatprep.subr.mxu0 0.0
    %334 = vmatpush1.msra.mxu0 0.0
    %335 = vmatprep.subr.mxu0 0.0
    %336 = vmatpush1.msra.mxu0 0.0
    %337 = vmatprep.subr.mxu0 0.0
    %338 = vmatpush1.msra.mxu0 0.0
    %339 = vmatprep.subr.mxu0 0.0
    %340 = vmatpush1.msra.mxu0 0.0
    %341 = vmatprep.subr.mxu0 0.0
    %342 = vmatpush1.msra.mxu0 0.0
    %343 = vmatprep.subr.mxu0 0.0
    %344 = vmatpush1.msra.mxu0 0.0
    %345 = vmatprep.subr.mxu0 0.0
    %346 = vmatpush1.msra.mxu0 0.0
    %347 = vmatprep.mubr.f32.mxu0 0.0
    %348 = vmatmul.mubr.f32.gmra.mrb[0].mxu0 %v188
    %v349 = vpop.f32.mrb[0].mxu0
    %v350 = vadd.f32 0.0, %v349
    %v351 = vpop.f32.mrb[0].mxu0
    %352 = vmatprep.mubr.f32.mxu0 0.0
    %353 = vmatmul.mubr.f32.gmra.mrb[0].mxu0 %v191
    %v354 = vpop.f32.mrb[0].mxu0
    %v355 = vadd.f32 0.0, %v354
    %v356 = vpop.f32.mrb[0].mxu0
    %357 = vmatprep.mubr.f32.mxu0 0.0
    %358 = vmatmul.mubr.f32.gmra.mrb[0].mxu0 %v194
    %v359 = vpop.f32.mrb[0].mxu0
    %v360 = vadd.f32 0.0, %v359
    %v361 = vpop.f32.mrb[0].mxu0
    %362 = vmatprep.mubr.f32.mxu0 0.0
    %363 = vmatmul.mubr.f32.gmra.mrb[0].mxu0 %v197
    %v364 = vpop.f32.mrb[0].mxu0
    %v365 = vadd.f32 0.0, %v364
    %v366 = vpop.f32.mrb[0].mxu0
    %367 = vmatprep.mubr.f32.mxu0 0.0
    %368 = vmatmul.mubr.f32.gmra.mrb[0].mxu0 %v200
    %v369 = vpop.f32.mrb[0].mxu0
    %v370 = vadd.f32 0.0, %v369
    %v371 = vpop.f32.mrb[0].mxu0
    %372 = vmatprep.mubr.f32.mxu0 0.0
    %373 = vmatmul.mubr.f32.gmra.mrb[0].mxu0 %v203
    %v374 = vpop.f32.mrb[0].mxu0
    %v375 = vadd.f32 0.0, %v374
    %v376 = vpop.f32.mrb[0].mxu0
    %377 = vmatprep.mubr.f32.mxu0 0.0
    %378 = vmatmul.mubr.f32.gmra.mrb[0].mxu0 %v206
    %v379 = vpop.f32.mrb[0].mxu0
    %v380 = vadd.f32 0.0, %v379
    %v381 = vpop.f32.mrb[0].mxu0
    %382 = vmatprep.mubr.f32.mxu0 0.0
    %383 = vmatmul.mubr.f32.gmra.mrb[0].mxu0 %v209
    %v384 = vpop.f32.mrb[0].mxu0
    %v385 = vadd.f32 0.0, %v384
    %v386 = vpop.f32.mrb[0].mxu0
    %387 = vmatprep.mubr.f32.mxu0 0.0
    %388 = vmatmul.mubr.f32.gmra.mrb[0].mxu0 %v212
    %v389 = vpop.f32.mrb[0].mxu0
    %v390 = vadd.f32 0.0, %v389
    %v391 = vpop.f32.mrb[0].mxu0
    %392 = vmatprep.mubr.f32.mxu0 0.0
    %393 = vmatmul.mubr.f32.gmra.mrb[0].mxu0 %v215
    %v394 = vpop.f32.mrb[0].mxu0
    %v395 = vadd.f32 0.0, %v394
    %v396 = vpop.f32.mrb[0].mxu0
    %397 = vmatprep.mubr.f32.mxu0 0.0
    %398 = vmatmul.mubr.f32.gmra.mrb[0].mxu0 %v218
    %v399 = vpop.f32.mrb[0].mxu0
    %v400 = vadd.f32 0.0, %v399
    %v401 = vpop.f32.mrb[0].mxu0
    %402 = vmatprep.mubr.f32.mxu0 0.0
    %403 = vmatmul.mubr.f32.gmra.mrb[0].mxu0 %v221
    %v404 = vpop.f32.mrb[0].mxu0
    %v405 = vadd.f32 0.0, %v404
    %v406 = vpop.f32.mrb[0].mxu0
    %407 = vmatprep.mubr.f32.mxu0 0.0
    %408 = vmatmul.mubr.f32.gmra.mrb[0].mxu0 %v224
    %v409 = vpop.f32.mrb[0].mxu0
    %v410 = vadd.f32 0.0, %v409
    %v411 = vpop.f32.mrb[0].mxu0
    %412 = vmatprep.mubr.f32.mxu0 0.0
    %413 = vmatmul.mubr.f32.gmra.mrb[0].mxu0 %v227
    %v414 = vpop.f32.mrb[0].mxu0
    %v415 = vadd.f32 0.0, %v414
    %v416 = vpop.f32.mrb[0].mxu0
    %417 = vmatprep.mubr.f32.mxu0 0.0
    %418 = vmatmul.mubr.f32.gmra.mrb[0].mxu0 %v230
    %v419 = vpop.f32.mrb[0].mxu0
    %v420 = vadd.f32 0.0, %v419
    %v421 = vpop.f32.mrb[0].mxu0
    %422 = vmatprep.mubr.f32.mxu0 0.0
    %423 = vmatmul.mubr.f32.gmra.mrb[0].mxu0 %v233
    %v424 = vpop.f32.mrb[0].mxu0
    %v425 = vadd.f32 0.0, %v424
    %v426 = vpop.f32.mrb[0].mxu0
    %427 = vmatprep.mubr.f32.mxu0 0.0
    %428 = vmatmul.mubr.f32.gmra.mrb[0].mxu0 %v236
    %v429 = vpop.f32.mrb[0].mxu0
    %v430 = vadd.f32 0.0, %v429
    %v431 = vpop.f32.mrb[0].mxu0
    %432 = vmatprep.mubr.f32.mxu0 0.0
    %433 = vmatmul.mubr.f32.gmra.mrb[0].mxu0 %v239
    %v434 = vpop.f32.mrb[0].mxu0
    %v435 = vadd.f32 0.0, %v434
    %v436 = vpop.f32.mrb[0].mxu0
    %437 = vmatprep.mubr.f32.mxu0 0.0
    %438 = vmatmul.mubr.f32.gmra.mrb[0].mxu0 %v242
    %v439 = vpop.f32.mrb[0].mxu0
    %v440 = vadd.f32 0.0, %v439
    %v441 = vpop.f32.mrb[0].mxu0
    %442 = vmatprep.mubr.f32.mxu0 0.0
    %443 = vmatmul.mubr.f32.gmra.mrb[0].mxu0 %v245
    %v444 = vpop.f32.mrb[0].mxu0
    %v445 = vadd.f32 0.0, %v444
    %v446 = vpop.f32.mrb[0].mxu0
    %447 = vmatprep.mubr.f32.mxu0 0.0
    %448 = vmatmul.mubr.f32.gmra.mrb[0].mxu0 %v248
    %v449 = vpop.f32.mrb[0].mxu0
    %v450 = vadd.f32 0.0, %v449
    %v451 = vpop.f32.mrb[0].mxu0
    %452 = vmatprep.mubr.f32.mxu0 0.0
    %453 = vmatmul.mubr.f32.gmra.mrb[0].mxu0 %v251
    %v454 = vpop.f32.mrb[0].mxu0
    %v455 = vadd.f32 0.0, %v454
    %v456 = vpop.f32.mrb[0].mxu0
    %457 = vmatprep.mubr.f32.mxu0 0.0
    %458 = vmatmul.mubr.f32.gmra.mrb[0].mxu0 %v254
    %v459 = vpop.f32.mrb[0].mxu0
    %v460 = vadd.f32 0.0, %v459
    %v461 = vpop.f32.mrb[0].mxu0
    %462 = vmatprep.mubr.f32.mxu0 0.0
    %463 = vmatmul.mubr.f32.gmra.mrb[0].mxu0 %v257
    %v464 = vpop.f32.mrb[0].mxu0
    %v465 = vadd.f32 0.0, %v464
    %v466 = vpop.f32.mrb[0].mxu0
    %467 = vmatprep.mubr.f32.mxu0 0.0
    %468 = vmatmul.mubr.f32.gmra.mrb[0].mxu0 %v260
    %v469 = vpop.f32.mrb[0].mxu0
    %v470 = vadd.f32 0.0, %v469
    %v471 = vpop.f32.mrb[0].mxu0
    %472 = vmatprep.mubr.f32.mxu0 0.0
    %473 = vmatmul.mubr.f32.gmra.mrb[0].mxu0 %v263
    %v474 = vpop.f32.mrb[0].mxu0
    %v475 = vadd.f32 0.0, %v474
    %v476 = vpop.f32.mrb[0].mxu0
    %477 = vmatprep.mubr.f32.mxu0 0.0
    %478 = vmatmul.mubr.f32.gmra.mrb[0].mxu0 %v266
    %v479 = vpop.f32.mrb[0].mxu0
    %v480 = vadd.f32 0.0, %v479
    %v481 = vpop.f32.mrb[0].mxu0
    %482 = vmatprep.mubr.f32.mxu0 0.0
    %483 = vmatmul.mubr.f32.gmra.mrb[0].mxu0 %v269
    %v484 = vpop.f32.mrb[0].mxu0
    %v485 = vadd.f32 0.0, %v484
    %v486 = vpop.f32.mrb[0].mxu0
    %487 = vmatprep.mubr.f32.mxu0 0.0
    %488 = vmatmul.mubr.f32.gmra.mrb[0].mxu0 %v272
    %v489 = vpop.f32.mrb[0].mxu0
    %v490 = vadd.f32 0.0, %v489
    %v491 = vpop.f32.mrb[0].mxu0
    %492 = vmatprep.mubr.f32.mxu0 0.0
    %493 = vmatmul.mubr.f32.gmra.mrb[0].mxu0 %v275
    %v494 = vpop.f32.mrb[0].mxu0
    %v495 = vadd.f32 0.0, %v494
    %v496 = vpop.f32.mrb[0].mxu0
    %497 = vmatprep.mubr.f32.mxu0 0.0
    %498 = vmatmul.mubr.f32.gmra.mrb[0].mxu0 %v278
    %v499 = vpop.f32.mrb[0].mxu0
    %v500 = vadd.f32 0.0, %v499
    %v501 = vpop.f32.mrb[0].mxu0
    %502 = vmatprep.mubr.f32.mxu0 0.0
    %503 = vmatmul.mubr.f32.gmra.mrb[0].mxu0 %v281
    %v504 = vpop.f32.mrb[0].mxu0
    %v505 = vadd.f32 0.0, %v504
    %v506 = vpop.f32.mrb[0].mxu0
    %507 = vdwg.mxu0
    %v508 = vsel %vm118, 1, 0
    %v509 = vsel %vm119, 1, 0
    %v510 = vsel %vm120, 1, 0
    %v511 = vsel %vm121, 1, 0
    %v512 = vsel %vm122, 1, 0
    %v513 = vsel %vm123, 1, 0
    %v514 = vsel %vm124, 1, 0
    %v515 = vsel %vm125, 1, 0
    %v516 = vsel %vm126, 1, 0
    %v517 = vsel %vm127, 1, 0
    %v518 = vsel %vm128, 1, 0
    %v519 = vsel %vm129, 1, 0
    %v520 = vsel %vm130, 1, 0
    %v521 = vsel %vm131, 1, 0
    %v522 = vsel %vm132, 1, 0
    %v523 = vsel %vm133, 1, 0
    %v524 = vsel %vm134, 1, 0
    %v525 = vsel %vm135, 1, 0
    %v526 = vsel %vm136, 1, 0
    %v527 = vsel %vm137, 1, 0
    %v528 = vsel %vm138, 1, 0
    %v529 = vsel %vm139, 1, 0
    %v530 = vsel %vm140, 1, 0
    %v531 = vsel %vm141, 1, 0
    %v532 = vsel %vm142, 1, 0
    %v533 = vsel %vm143, 1, 0
    %v534 = vsel %vm144, 1, 0
    %v535 = vsel %vm145, 1, 0
    %v536 = vsel %vm146, 1, 0
    %v537 = vsel %vm147, 1, 0
    %v538 = vsel %vm148, 1, 0
    %v539 = vsel %vm149, 1, 0
    %vm540 = vcmp.eq.s32.totalorder %v508, 1
    %vm541 = vcmp.eq.s32.totalorder %v509, 1
    %vm542 = vcmp.eq.s32.totalorder %v510, 1
    %vm543 = vcmp.eq.s32.totalorder %v511, 1
    %vm544 = vcmp.eq.s32.totalorder %v512, 1
    %vm545 = vcmp.eq.s32.totalorder %v513, 1
    %vm546 = vcmp.eq.s32.totalorder %v514, 1
    %vm547 = vcmp.eq.s32.totalorder %v515, 1
    %vm548 = vcmp.eq.s32.totalorder %v516, 1
    %vm549 = vcmp.eq.s32.totalorder %v517, 1
    %vm550 = vcmp.eq.s32.totalorder %v518, 1
    %vm551 = vcmp.eq.s32.totalorder %v519, 1
    %vm552 = vcmp.eq.s32.totalorder %v520, 1
    %vm553 = vcmp.eq.s32.totalorder %v521, 1
    %vm554 = vcmp.eq.s32.totalorder %v522, 1
    %vm555 = vcmp.eq.s32.totalorder %v523, 1
    %vm556 = vcmp.eq.s32.totalorder %v524, 1
    %vm557 = vcmp.eq.s32.totalorder %v525, 1
    %vm558 = vcmp.eq.s32.totalorder %v526, 1
    %vm559 = vcmp.eq.s32.totalorder %v527, 1
    %vm560 = vcmp.eq.s32.totalorder %v528, 1
    %vm561 = vcmp.eq.s32.totalorder %v529, 1
    %vm562 = vcmp.eq.s32.totalorder %v530, 1
    %vm563 = vcmp.eq.s32.totalorder %v531, 1
    %vm564 = vcmp.eq.s32.totalorder %v532, 1
    %vm565 = vcmp.eq.s32.totalorder %v533, 1
    %vm566 = vcmp.eq.s32.totalorder %v534, 1
    %vm567 = vcmp.eq.s32.totalorder %v535, 1
    %vm568 = vcmp.eq.s32.totalorder %v536, 1
    %vm569 = vcmp.eq.s32.totalorder %v537, 1
    %vm570 = vcmp.eq.s32.totalorder %v538, 1
    %vm571 = vcmp.eq.s32.totalorder %v539, 1
    %v572 = vsel %vm540, %v350, 0.0
    %v573 = vsel %vm541, %v355, 0.0
    %v574 = vsel %vm542, %v360, 0.0
    %v575 = vsel %vm543, %v365, 0.0
    %v576 = vsel %vm544, %v370, 0.0
    %v577 = vsel %vm545, %v375, 0.0
    %v578 = vsel %vm546, %v380, 0.0
    %v579 = vsel %vm547, %v385, 0.0
    %v580 = vsel %vm548, %v390, 0.0
    %v581 = vsel %vm549, %v395, 0.0
    %v582 = vsel %vm550, %v400, 0.0
    %v583 = vsel %vm551, %v405, 0.0
    %v584 = vsel %vm552, %v410, 0.0
    %v585 = vsel %vm553, %v415, 0.0
    %v586 = vsel %vm554, %v420, 0.0
    %v587 = vsel %vm555, %v425, 0.0
    %v588 = vsel %vm556, %v430, 0.0
    %v589 = vsel %vm557, %v435, 0.0
    %v590 = vsel %vm558, %v440, 0.0
    %v591 = vsel %vm559, %v445, 0.0
    %v592 = vsel %vm560, %v450, 0.0
    %v593 = vsel %vm561, %v455, 0.0
    %v594 = vsel %vm562, %v460, 0.0
    %v595 = vsel %vm563, %v465, 0.0
    %v596 = vsel %vm564, %v470, 0.0
    %v597 = vsel %vm565, %v475, 0.0
    %v598 = vsel %vm566, %v480, 0.0
    %v599 = vsel %vm567, %v485, 0.0
    %v600 = vsel %vm568, %v490, 0.0
    %v601 = vsel %vm569, %v495, 0.0
    %v602 = vsel %vm570, %v500, 0.0
    %v603 = vsel %vm571, %v505, 0.0
    %v604 = vld [vmem:[#allocation2] sm:$0x3]
    %vm605 = vcmask 64512
    %v606 = vsel %vm605, %v572, 0.0
    %v607 = vsel %vm605, %v573, 0.0
    %v608 = vadd.f32 %v606, %v607
    %v609 = vsel %vm605, %v574, 0.0
    %v610 = vadd.f32 %v608, %v609
    %v611 = vsel %vm605, %v575, 0.0
    %v612 = vadd.f32 %v610, %v611
    %v613 = vsel %vm605, %v576, 0.0
    %v614 = vadd.f32 %v612, %v613
    %v615 = vsel %vm605, %v577, 0.0
    %v616 = vadd.f32 %v614, %v615
    %v617 = vsel %vm605, %v578, 0.0
    %v618 = vadd.f32 %v616, %v617
    %v619 = vsel %vm605, %v579, 0.0
    %v620 = vadd.f32 %v618, %v619
    %v621 = vsel %vm605, %v580, 0.0
    %v622 = vadd.f32 %v620, %v621
    %v623 = vsel %vm605, %v581, 0.0
    %v624 = vadd.f32 %v622, %v623
    %v625 = vsel %vm605, %v582, 0.0
    %v626 = vadd.f32 %v624, %v625
    %v627 = vsel %vm605, %v583, 0.0
    %v628 = vadd.f32 %v626, %v627
    %v629 = vsel %vm605, %v584, 0.0
    %v630 = vadd.f32 %v628, %v629
    %v631 = vsel %vm605, %v585, 0.0
    %v632 = vadd.f32 %v630, %v631
    %v633 = vsel %vm605, %v586, 0.0
    %v634 = vadd.f32 %v632, %v633
    %v635 = vsel %vm605, %v587, 0.0
    %v636 = vadd.f32 %v634, %v635
    %v637 = vsel %vm605, %v588, 0.0
    %v638 = vadd.f32 %v636, %v637
    %v639 = vsel %vm605, %v589, 0.0
    %v640 = vadd.f32 %v638, %v639
    %v641 = vsel %vm605, %v590, 0.0
    %v642 = vadd.f32 %v640, %v641
    %v643 = vsel %vm605, %v591, 0.0
    %v644 = vadd.f32 %v642, %v643
    %v645 = vsel %vm605, %v592, 0.0
    %v646 = vadd.f32 %v644, %v645
    %v647 = vsel %vm605, %v593, 0.0
    %v648 = vadd.f32 %v646, %v647
    %v649 = vsel %vm605, %v594, 0.0
    %v650 = vadd.f32 %v648, %v649
    %v651 = vsel %vm605, %v595, 0.0
    %v652 = vadd.f32 %v650, %v651
    %v653 = vsel %vm605, %v596, 0.0
    %v654 = vadd.f32 %v652, %v653
    %v655 = vsel %vm605, %v597, 0.0
    %v656 = vadd.f32 %v654, %v655
    %v657 = vsel %vm605, %v598, 0.0
    %v658 = vadd.f32 %v656, %v657
    %v659 = vsel %vm605, %v599, 0.0
    %v660 = vadd.f32 %v658, %v659
    %v661 = vsel %vm605, %v600, 0.0
    %v662 = vadd.f32 %v660, %v661
    %v663 = vsel %vm605, %v601, 0.0
    %v664 = vadd.f32 %v662, %v663
    %v665 = vsel %vm605, %v602, 0.0
    %v666 = vadd.f32 %v664, %v665
    %v667 = vsel %vm605, %v603, 0.0
    %v668 = vadd.f32 %v666, %v667
    %v669 = vrot.slane %v668, 4
    %v670 = vadd.f32 %v668, %v669
    %v671 = vrot.slane %v670, 2
    %v672 = vadd.f32 %v670, %v671
    %v673 = vrot.slane %v672, 1
    %v674 = vadd.f32 %v672, %v673
    %v675 = vmul.f32 %v572, %v572
    %v676 = vmul.f32 %v573, %v573
    %v677 = vmul.f32 %v574, %v574
    %v678 = vmul.f32 %v575, %v575
    %v679 = vmul.f32 %v576, %v576
    %v680 = vmul.f32 %v577, %v577
    %v681 = vmul.f32 %v578, %v578
    %v682 = vmul.f32 %v579, %v579
    %v683 = vmul.f32 %v580, %v580
    %v684 = vmul.f32 %v581, %v581
    %v685 = vmul.f32 %v582, %v582
    %v686 = vmul.f32 %v583, %v583
    %v687 = vmul.f32 %v584, %v584
    %v688 = vmul.f32 %v585, %v585
    %v689 = vmul.f32 %v586, %v586
    %v690 = vmul.f32 %v587, %v587
    %v691 = vmul.f32 %v588, %v588
    %v692 = vmul.f32 %v589, %v589
    %v693 = vmul.f32 %v590, %v590
    %v694 = vmul.f32 %v591, %v591
    %v695 = vmul.f32 %v592, %v592
    %v696 = vmul.f32 %v593, %v593
    %v697 = vmul.f32 %v594, %v594
    %v698 = vmul.f32 %v595, %v595
    %v699 = vmul.f32 %v596, %v596
    %v700 = vmul.f32 %v597, %v597
    %v701 = vmul.f32 %v598, %v598
    %v702 = vmul.f32 %v599, %v599
    %v703 = vmul.f32 %v600, %v600
    %v704 = vmul.f32 %v601, %v601
    %v705 = vmul.f32 %v602, %v602
    %v706 = vmul.f32 %v603, %v603
    %v707 = vsel %vm605, %v675, 0.0
    %v708 = vsel %vm605, %v676, 0.0
    %v709 = vadd.f32 %v707, %v708
    %v710 = vsel %vm605, %v677, 0.0
    %v711 = vadd.f32 %v709, %v710
    %v712 = vsel %vm605, %v678, 0.0
    %v713 = vadd.f32 %v711, %v712
    %v714 = vsel %vm605, %v679, 0.0
    %v715 = vadd.f32 %v713, %v714
    %v716 = vsel %vm605, %v680, 0.0
    %v717 = vadd.f32 %v715, %v716
    %v718 = vsel %vm605, %v681, 0.0
    %v719 = vadd.f32 %v717, %v718
    %v720 = vsel %vm605, %v682, 0.0
    %v721 = vadd.f32 %v719, %v720
    %v722 = vsel %vm605, %v683, 0.0
    %v723 = vadd.f32 %v721, %v722
    %v724 = vsel %vm605, %v684, 0.0
    %v725 = vadd.f32 %v723, %v724
    %v726 = vsel %vm605, %v685, 0.0
    %v727 = vadd.f32 %v725, %v726
    %v728 = vsel %vm605, %v686, 0.0
    %v729 = vadd.f32 %v727, %v728
    %v730 = vsel %vm605, %v687, 0.0
    %v731 = vadd.f32 %v729, %v730
    %v732 = vsel %vm605, %v688, 0.0
    %v733 = vadd.f32 %v731, %v732
    %v734 = vsel %vm605, %v689, 0.0
    %v735 = vadd.f32 %v733, %v734
    %v736 = vsel %vm605, %v690, 0.0
    %v737 = vadd.f32 %v735, %v736
    %v738 = vsel %vm605, %v691, 0.0
    %v739 = vadd.f32 %v737, %v738
    %v740 = vsel %vm605, %v692, 0.0
    %v741 = vadd.f32 %v739, %v740
    %v742 = vsel %vm605, %v693, 0.0
    %v743 = vadd.f32 %v741, %v742
    %v744 = vsel %vm605, %v694, 0.0
    %v745 = vadd.f32 %v743, %v744
    %v746 = vsel %vm605, %v695, 0.0
    %v747 = vadd.f32 %v745, %v746
    %v748 = vsel %vm605, %v696, 0.0
    %v749 = vadd.f32 %v747, %v748
    %v750 = vsel %vm605, %v697, 0.0
    %v751 = vadd.f32 %v749, %v750
    %v752 = vsel %vm605, %v698, 0.0
    %v753 = vadd.f32 %v751, %v752
    %v754 = vsel %vm605, %v699, 0.0
    %v755 = vadd.f32 %v753, %v754
    %v756 = vsel %vm605, %v700, 0.0
    %v757 = vadd.f32 %v755, %v756
    %v758 = vsel %vm605, %v701, 0.0
    %v759 = vadd.f32 %v757, %v758
    %v760 = vsel %vm605, %v702, 0.0
    %v761 = vadd.f32 %v759, %v760
    %v762 = vsel %vm605, %v703, 0.0
    %v763 = vadd.f32 %v761, %v762
    %v764 = vsel %vm605, %v704, 0.0
    %v765 = vadd.f32 %v763, %v764
    %v766 = vsel %vm605, %v705, 0.0
    %v767 = vadd.f32 %v765, %v766
    %v768 = vsel %vm605, %v706, 0.0
    %v769 = vadd.f32 %v767, %v768
    %v770 = vrot.slane %v769, 4
    %v771 = vadd.f32 %v769, %v770
    %v772 = vrot.slane %v771, 2
    %v773 = vadd.f32 %v771, %v772
    %v774 = vrot.slane %v773, 1
    %v775 = vadd.f32 %v773, %v774
    %vm776 = vcmask 1040384
    %v777 = vsel %vm776, %v674, %v775
    %v778 = vadd.f32 %v604, %v777
    %vm779 = vcmask 58368
    %780 = vst.msk [vmem:[#allocation2] sm:$0x3] %vm779, %v778
    // Predicated region
    $region14: #{tpu_custom_call.1} parent=1 // pred_check
      _
    $region15: #{tpu_custom_call.1} parent=1 // pred_check_branch
      %782 = sbr.rel (0) target = $region17
    $region16: #{tpu_custom_call.1} parent=1 // pred_region
      %s784 = ssub.s32 32, 32
      %785 = vsyncadd [#allocation3], %s784
      %s787 = sshll.u32 [#allocation2], 4
      %s788 = int_to_ptr.vmem [resolvable:$true] %s787
      %790 = dma.vmem_to_hbm [thread:$0]  %s788, 32, %s2, [#allocation3]
    $region17: #{tpu_custom_call.1} parent=1 // pred_fallthru
      _
    // Predicated region
    $region18: #{tpu_custom_call.1} parent=1 // pred_check
      _
    $region19: #{tpu_custom_call.1} parent=1 // pred_check_branch
      %792 = sbr.rel (0) target = $region21
    $region20: #{tpu_custom_call.1} parent=1 // pred_region
      %793 = dma.done [#allocation3], 32
    $region21: #{tpu_custom_call.1} parent=1 // pred_fallthru
      _
    %794 = vsyncpa [#allocation3], 1

</llo_original>
